<compile_context>
chip_gen: v6e
topology: v6e:2x2x1
jax: 0.10.0
libtpu: 0.0.40
codegen_flags: <defaults>
</compile_context>

<pallas_src>
import functools

import jax
import jax.numpy as jnp
from jax.experimental import pallas as pl
from jax.experimental.pallas import tpu as pltpu


def _round_up(x: int, m: int) -> int:
    return (x + m - 1) // m * m


def output_block_kernel(x_ref, w1t_ref, b1_ref, w2_ref, b2_ref, o_ref):
    # x_ref:  (TN, H)   w1t_ref: (H, H)   b1_ref: (1, H)
    # w2_ref: (1, H)    b2_ref:  (1,)  in SMEM
    # o_ref:  (TN, 1)
    x = x_ref[...]

    # lin1 + ReLU  (MXU matmul, f32 accumulation)
    h = jnp.dot(x, w1t_ref[...], preferred_element_type=jnp.float32) + b1_ref[...]
    h = jnp.maximum(h, 0.0)

    # lin2: output width is 1, so an MXU matmul would use 1/256 of the array.
    # Do it on the VPU (mul) + XLU (lane reduce) instead — both otherwise-idle
    # units — against the lane-dense (1, H) weight row.
    y = jnp.sum(h * w2_ref[...], axis=-1, keepdims=True) + b2_ref[0]

    # Softplus with PyTorch semantics (beta=1, threshold=20):
    #   softplus(y) = y              if y > 20
    #               = log1p(exp(y))  otherwise
    o_ref[...] = jnp.where(
        y > 20.0, y, jnp.log1p(jnp.exp(jnp.minimum(y, 20.0)))
    ).astype(o_ref.dtype)


def output_block(x, w1, b1, w2, b2, *, tn=None):
    """x: [..., H]; w1: [H, H] (torch layout: out, in); b1: [H]; w2: [1, H]; b2: [1]."""
    orig_shape = x.shape
    H = orig_shape[-1]
    x2 = x.reshape(-1, H)
    N = x2.shape[0]

    # Row tile: multiple of 8 (sublane), capped so big-N cases stay well inside
    # VMEM and get a multi-step, double-buffered pipeline.
    if tn is None:
        tn = min(512, _round_up(N, 8))
    tn = _round_up(tn, 8)
    n_pad = _round_up(N, tn)
    if n_pad != N:
        x2 = jnp.pad(x2, ((0, n_pad - N), (0, 0)))

    w1t = w1.T                      # (H, H)  — so the kernel does x @ W1^T
    b1r = b1.reshape(1, H)          # (1, H)  lane-dense
    w2r = w2.reshape(1, H)          # (1, H)  lane-dense (NOT transposed to (H,1))
    b2r = b2.reshape(1)             # (1,)    SMEM scalar

    itemsize = jnp.dtype(x2.dtype).itemsize
    # Rough VMEM footprint: double-buffered x/out tiles + resident weights
    # (double-buffered by default) + f32 intermediate.  Clamp to [32, 64] MiB so
    # the same code is valid on v5e/v6e (128 MiB physical) and v7x (64 MiB).
    vmem_bytes = (
        2 * tn * H * itemsize
        + 2 * tn * itemsize
        + 2 * (H * H + 2 * H) * itemsize
        + tn * H * 4
    )
    vmem_limit = int(min(max(2 * vmem_bytes, 32 * 1024 * 1024), 64 * 1024 * 1024))

    grid = (n_pad // tn,)
    out = pl.pallas_call(
        output_block_kernel,
        out_shape=jax.ShapeDtypeStruct((n_pad, 1), x2.dtype),
        grid=grid,
        in_specs=[
            pl.BlockSpec((tn, H), lambda i: (i, 0)),          # x: streamed over rows
            pl.BlockSpec((H, H), lambda i: (0, 0)),           # W1^T: VMEM-resident
            pl.BlockSpec((1, H), lambda i: (0, 0)),           # b1:   VMEM-resident
            pl.BlockSpec((1, H), lambda i: (0, 0)),           # w2:   VMEM-resident
            pl.BlockSpec(memory_space=pltpu.MemorySpace.SMEM),  # b2: SMEM scalar
        ],
        out_specs=pl.BlockSpec((tn, 1), lambda i: (i, 0)),
        compiler_params=pltpu.CompilerParams(
            dimension_semantics=("parallel",),   # 2-TC sharding on v7x
            vmem_limit_bytes=vmem_limit,
        ),
        cost_estimate=pl.CostEstimate(
            flops=2 * n_pad * H * H + 4 * n_pad * H,
            transcendentals=2 * n_pad,
            bytes_accessed=itemsize * (n_pad * H + H * H + 2 * H + 1 + n_pad),
        ),
    )(x2, w1t, b1r, w2r, b2r)

    return out[:N].reshape(*orig_shape[:-1], 1)


def init_params(key, hidden_size, dtype=jnp.float32):
    """Deterministic init mimicking torch.nn.Linear default (uniform(-1/sqrt(fan_in), +))."""
    k1, k2, k3, k4 = jax.random.split(key, 4)
    bound1 = 1.0 / jnp.sqrt(hidden_size)
    w1 = jax.random.uniform(k1, (hidden_size, hidden_size), dtype, -bound1, bound1)
    b1 = jax.random.uniform(k2, (hidden_size,), dtype, -bound1, bound1)
    w2 = jax.random.uniform(k3, (1, hidden_size), dtype, -bound1, bound1)
    b2 = jax.random.uniform(k4, (1,), dtype, -bound1, bound1)
    return w1, b1, w2, b2


def _reference(x, w1, b1, w2, b2):
    return jax.nn.softplus(jnp.maximum(x @ w1.T + b1, 0.0) @ w2.T + b2)


if __name__ == "__main__":
    key = jax.random.PRNGKey(0)
    kx, kp, kx2, kp2 = jax.random.split(key, 4)

    # Small shape consistent with the module (N=8 samples, hidden=32).
    N, H = 8, 32
    x = jax.random.normal(kx, (N, H), jnp.float32)
    w1, b1, w2, b2 = init_params(kp, H)
    out = jax.block_until_ready(output_block(x, w1, b1, w2, b2))
    ref = _reference(x, w1, b1, w2, b2)
    assert out.shape == (N, 1)
    assert jnp.allclose(out, ref, atol=1e-5, rtol=1e-5)

    # Ragged, multi-tile case: exercises N-tiling, zero-padding and the
    # double-buffered pipeline over the row grid.
    N2, H2 = 300, 128
    x2 = jax.random.normal(kx2, (N2, H2), jnp.float32)
    w1b, b1b, w2b, b2b = init_params(kp2, H2)
    out2 = jax.block_until_ready(output_block(x2, w1b, b1b, w2b, b2b, tn=128))
    ref2 = _reference(x2, w1b, b1b, w2b, b2b)
    assert out2.shape == (N2, 1)
    assert jnp.allclose(out2, ref2, atol=1e-4, rtol=1e-4)

    print("KERNEL_OK")
</pallas_src>

<mosaic_0001>
module attributes {stable_mosaic.version = 11 : i64} {
  func.func @output_block_kernel(%arg0: i32, %arg1: memref<8x32xf32, #tpu.memory_space<vmem>>, %arg2: memref<32x32xf32, #tpu.memory_space<vmem>>, %arg3: memref<1x32xf32, #tpu.memory_space<vmem>>, %arg4: memref<1x32xf32, #tpu.memory_space<vmem>>, %arg5: memref<1xf32, #tpu.memory_space<smem>>, %arg6: memref<8x1xf32, #tpu.memory_space<vmem>>) attributes {dimension_semantics = [#tpu.dimension_semantics<parallel>], iteration_bounds = array<i64: 1>, scalar_prefetch = 0 : i64, scratch_operands = 0 : i64, tpu.core_type = #tpu.core_type<tc>, window_params = [{transform_indices = @transform_0, window_bounds = array<i64: 8, 32>}, {pipeline_mode = #tpu.pipeline_mode<synchronous>, transform_indices = @transform_1, window_bounds = array<i64: 32, 32>}, {pipeline_mode = #tpu.pipeline_mode<synchronous>, transform_indices = @transform_2, window_bounds = array<i64: 1, 32>}, {pipeline_mode = #tpu.pipeline_mode<synchronous>, transform_indices = @transform_3, window_bounds = array<i64: 1, 32>}, {transform_indices = @transform_4, window_bounds = array<i64: 1>}, {transform_indices = @transform_5, window_bounds = array<i64: 8, 1>}]} {
    %c0 = arith.constant 0 : index
    %c0_0 = arith.constant 0 : index
    %0 = vector.load %arg1[%c0, %c0_0] : memref<8x32xf32, #tpu.memory_space<vmem>>, vector<8x32xf32>
    %c0_1 = arith.constant 0 : index
    %c0_2 = arith.constant 0 : index
    %1 = vector.load %arg2[%c0_1, %c0_2] : memref<32x32xf32, #tpu.memory_space<vmem>>, vector<32x32xf32>
    %cst = arith.constant dense<0.000000e+00> : vector<8x32xf32>
    %2 = tpu.matmul %0, %1, %cst {dimension_numbers = #tpu.dot_dimension_numbers<[1], [0], [0], [1], [0, 0, 1, 1], [], []>} : vector<8x32xf32>, vector<32x32xf32>, vector<8x32xf32> -> vector<8x32xf32>
    %c0_3 = arith.constant 0 : index
    %c0_4 = arith.constant 0 : index
    %3 = vector.load %arg3[%c0_3, %c0_4] : memref<1x32xf32, #tpu.memory_space<vmem>>, vector<1x32xf32>
    %4 = vector.broadcast %3 : vector<1x32xf32> to vector<8x32xf32>
    %5 = arith.addf %2, %4 : vector<8x32xf32>
    %cst_5 = arith.constant 0.000000e+00 : f32
    %6 = vector.broadcast %cst_5 : f32 to vector<8x32xf32>
    %7 = arith.maximumf %5, %6 : vector<8x32xf32>
    %c0_6 = arith.constant 0 : index
    %c0_7 = arith.constant 0 : index
    %8 = vector.load %arg4[%c0_6, %c0_7] : memref<1x32xf32, #tpu.memory_space<vmem>>, vector<1x32xf32>
    %9 = vector.broadcast %8 : vector<1x32xf32> to vector<8x32xf32>
    %10 = arith.mulf %7, %9 : vector<8x32xf32>
    %cst_8 = arith.constant dense<0.000000e+00> : vector<8xf32>
    %11 = vector.multi_reduction <add>, %10, %cst_8 [1] : vector<8x32xf32> to vector<8xf32>
    %12 = vector.shape_cast %11 : vector<8xf32> to vector<8x1xf32>
    %c0_9 = arith.constant 0 : index
    %13 = memref.load %arg5[%c0_9] : memref<1xf32, #tpu.memory_space<smem>>
    %14 = vector.broadcast %13 : f32 to vector<8x1xf32>
    %15 = arith.addf %12, %14 : vector<8x1xf32>
    %cst_10 = arith.constant 2.000000e+01 : f32
    %16 = vector.broadcast %cst_10 : f32 to vector<8x1xf32>
    %17 = arith.cmpf ogt, %15, %16 : vector<8x1xf32>
    %cst_11 = arith.constant 2.000000e+01 : f32
    %18 = vector.broadcast %cst_11 : f32 to vector<8x1xf32>
    %19 = arith.minimumf %15, %18 : vector<8x1xf32>
    %20 = math.exp %19 : vector<8x1xf32>
    %21 = math.log1p %20 : vector<8x1xf32>
    %22 = arith.select %17, %15, %21 : vector<8x1xi1>, vector<8x1xf32>
    %c0_12 = arith.constant 0 : index
    %c0_13 = arith.constant 0 : index
    %23 = vector.load %arg6[%c0_12, %c0_13] : memref<8x1xf32, #tpu.memory_space<vmem>>, vector<8x1xf32>
    tpu.vector_store %arg6[%c0_12, %c0_13], %22 {strides = array<i32>} : memref<8x1xf32, #tpu.memory_space<vmem>>, vector<8x1xf32>,
    return
  }
  func.func @transform_0(%arg0: i32) -> (i32, i32) {
    %c0_i32 = arith.constant 0 : i32
    %c0_i32_0 = arith.constant 0 : i32
    return %arg0, %c0_i32 : i32, i32
  }
  func.func @transform_1(%arg0: i32) -> (i32, i32) {
    %c0_i32 = arith.constant 0 : i32
    %c0_i32_0 = arith.constant 0 : i32
    %c0_i32_1 = arith.constant 0 : i32
    return %c0_i32, %c0_i32_0 : i32, i32
  }
  func.func @transform_2(%arg0: i32) -> (i32, i32) {
    %c0_i32 = arith.constant 0 : i32
    %c0_i32_0 = arith.constant 0 : i32
    %c0_i32_1 = arith.constant 0 : i32
    return %c0_i32, %c0_i32_0 : i32, i32
  }
  func.func @transform_3(%arg0: i32) -> (i32, i32) {
    %c0_i32 = arith.constant 0 : i32
    %c0_i32_0 = arith.constant 0 : i32
    %c0_i32_1 = arith.constant 0 : i32
    return %c0_i32, %c0_i32_0 : i32, i32
  }
  func.func @transform_4(%arg0: i32) -> i32 {
    %c0_i32 = arith.constant 0 : i32
    %c0_i32_0 = arith.constant 0 : i32
    return %c0_i32 : i32
  }
  func.func @transform_5(%arg0: i32) -> (i32, i32) {
    %c0_i32 = arith.constant 0 : i32
    %c0_i32_0 = arith.constant 0 : i32
    return %arg0, %c0_i32 : i32, i32
  }
}

</mosaic_0001>

<llo_original>
// kernel: tpu_custom_call.1
$region0: #{tpu_custom_call.1}
  #allocation0 [shape = 'u32[]', space=smem, size = 0x4, offset = 0x4, fixed_abs, tag = 'smem constant byte address 0x4 - core index']
  #allocation1 [shape = 'u32[144,128]{1,0:T(1,128)}', space=vmem, size = 0x12000, scoped, tag = 'internal scratch']
  #allocation2 [shape = 'f32[1]{0:T(128)S(6)}', space=smem, size = 0x200, scoped, tag = 'scoped memory for tpu_custom_call.1']
  %s0 = inlined_call_operand.hbm [shape: f32[8,32], index: 0, kind: input, shape index: {}]
  %s1 = inlined_call_operand.hbm [shape: f32[32,32], index: 1, kind: input, shape index: {}]
  %s2 = inlined_call_operand.vmem [shape: f32[1,32], index: 2, kind: input, shape index: {}]
  %s3 = inlined_call_operand.vmem [shape: f32[1,32], index: 3, kind: input, shape index: {}]
  %s4 = inlined_call_operand.<no memory space> [shape: f32[1], index: 4, kind: input, shape index: {}]
  %s5 = inlined_call_operand.vmem [shape: f32[8,1], index: 5, kind: output, shape index: {}]
  %s6 = sld [smem:[#allocation0]]
  $region38: #{tpu_custom_call.1} parent=0
    _
  %s8 = ssub.s32 1, %s6
  %s9 = scalar_select 0, %s8, %s6
  %10 = sst [smem:[#allocation2]] %s4
  $region1: #{tpu_custom_call.1} parent=0
    #allocation3 [shape = 'u8[4096]{0}', space=vmem, size = 0x1000, scoped, tag = 'input window, operand 0, single buffered']
    #allocation4 [shape = 's32[1]{0}', space=sflag, size = 0x4, scoped, tag = 'scoped memory for tpu_custom_call.1']
    #allocation5 [shape = 'u8[16384]{0}', space=vmem, size = 0x4000, scoped, tag = 'input window, operand 1, single buffered']
    #allocation6 [shape = 's32[1]{0}', space=sflag, size = 0x4, scoped, tag = 'scoped memory for tpu_custom_call.1']
    %11 = vsyncpa [#allocation4], 0
    %12 = vsyncpa [#allocation6], 0
    // Predicated region
    $region2: #{tpu_custom_call.1} parent=1 // pred_check
      _
    $region3: #{tpu_custom_call.1} parent=1 // pred_check_branch
      %14 = sbr.rel (0) target = $region5
    $region4: #{tpu_custom_call.1} parent=1 // pred_region
      %s16 = ssub.s32 128, 128
      %17 = vsyncadd [#allocation4], %s16
      %s19 = sshll.u32 [#allocation3], 4
      %s20 = int_to_ptr.vmem [resolvable:$true] %s19
      %22 = dma.hbm_to_vmem [thread:$0]  %s0, 128, %s20, [#allocation4]
    $region5: #{tpu_custom_call.1} parent=1 // pred_fallthru
      _
    // Predicated region
    $region6: #{tpu_custom_call.1} parent=1 // pred_check
      _
    $region7: #{tpu_custom_call.1} parent=1 // pred_check_branch
      %24 = sbr.rel (0) target = $region9
    $region8: #{tpu_custom_call.1} parent=1 // pred_region
      %s26 = ssub.s32 512, 512
      %27 = vsyncadd [#allocation6], %s26
      %s28 = sshll.u32 [#allocation5], 4
      %s29 = int_to_ptr.vmem [resolvable:$true] %s28
      %34 = dma.hbm_to_vmem [thread:$0]  %s1, 512, %s29, [#allocation6], 128, 128, 8
    $region9: #{tpu_custom_call.1} parent=1 // pred_fallthru
      _
    // Predicated region
    $region10: #{tpu_custom_call.1} parent=1 // pred_check
      _
    $region11: #{tpu_custom_call.1} parent=1 // pred_check_branch
      %36 = sbr.rel (0) target = $region13
    $region12: #{tpu_custom_call.1} parent=1 // pred_region
      _
    $region13: #{tpu_custom_call.1} parent=1 // pred_fallthru
      _
    // Predicated region
    $region14: #{tpu_custom_call.1} parent=1 // pred_check
      _
    $region15: #{tpu_custom_call.1} parent=1 // pred_check_branch
      %38 = sbr.rel (0) target = $region17
    $region16: #{tpu_custom_call.1} parent=1 // pred_region
      _
    $region17: #{tpu_custom_call.1} parent=1 // pred_fallthru
      _
    // Predicated region
    $region18: #{tpu_custom_call.1} parent=1 // pred_check
      _
    $region19: #{tpu_custom_call.1} parent=1 // pred_check_branch
      %40 = sbr.rel (0) target = $region21
    $region20: #{tpu_custom_call.1} parent=1 // pred_region
      _
    $region21: #{tpu_custom_call.1} parent=1 // pred_fallthru
      _
    // Predicated region
    $region22: #{tpu_custom_call.1} parent=1 // pred_check
      _
    $region23: #{tpu_custom_call.1} parent=1 // pred_check_branch
      %42 = sbr.rel (0) target = $region25
    $region24: #{tpu_custom_call.1} parent=1 // pred_region
      %43 = dma.done [#allocation4], 128
    $region25: #{tpu_custom_call.1} parent=1 // pred_fallthru
      _
    // Predicated region
    $region26: #{tpu_custom_call.1} parent=1 // pred_check
      _
    $region27: #{tpu_custom_call.1} parent=1 // pred_check_branch
      %45 = sbr.rel (0) target = $region29
    $region28: #{tpu_custom_call.1} parent=1 // pred_region
      %46 = dma.done [#allocation6], 512
    $region29: #{tpu_custom_call.1} parent=1 // pred_fallthru
      _
    %v47 = vld [vmem:[#allocation3] sm:$0xff]
    %v48 = vld [vmem:[#allocation5] sm:$0xff]
    %v49 = vld [vmem:[#allocation5 + $0x8] sm:$0xff]
    %v50 = vld [vmem:[#allocation5 + $0x10] sm:$0xff]
    %v51 = vld [vmem:[#allocation5 + $0x18] sm:$0xff]
    %v52 = vld [vmem:[%s2] sm:$0x1]
    %v54 = vlaneseq
    %v55 = vshrl.u32 %v54, 7
    %v56 = vsub.s32 0, %v55
    %v57 = vrot.slane %v52, %v56
    %vm59 = vcmask 261120
    %v61 = vsel %vm59, %v47, 0
    %63 = vmatprep.subr.mxu0 0.0
    %64 = vmatpush1.msra.mxu0 0.0
    %65 = vmatprep.subr.mxu0 0.0
    %66 = vmatpush1.msra.mxu0 0.0
    %67 = vmatprep.subr.mxu0 0.0
    %68 = vmatpush1.msra.mxu0 0.0
    %69 = vmatprep.subr.mxu0 0.0
    %70 = vmatpush1.msra.mxu0 0.0
    %71 = vmatprep.subr.mxu0 0.0
    %72 = vmatpush1.msra.mxu0 0.0
    %73 = vmatprep.subr.mxu0 0.0
    %74 = vmatpush1.msra.mxu0 0.0
    %75 = vmatprep.subr.mxu0 0.0
    %76 = vmatpush1.msra.mxu0 0.0
    %77 = vmatprep.subr.mxu0 0.0
    %78 = vmatpush1.msra.mxu0 0.0
    %79 = vmatprep.subr.mxu0 0.0
    %80 = vmatpush1.msra.mxu0 0.0
    %81 = vmatprep.subr.mxu0 0.0
    %82 = vmatpush1.msra.mxu0 0.0
    %83 = vmatprep.subr.mxu0 0.0
    %84 = vmatpush1.msra.mxu0 0.0
    %85 = vmatprep.subr.mxu0 0.0
    %86 = vmatpush1.msra.mxu0 0.0
    %87 = vmatprep.subr.mxu0 0.0
    %88 = vmatpush1.msra.mxu0 %v51
    %89 = vmatprep.subr.mxu0 0.0
    %90 = vmatpush1.msra.mxu0 %v50
    %91 = vmatprep.subr.mxu0 0.0
    %92 = vmatpush1.msra.mxu0 %v49
    %93 = vmatprep.subr.mxu0 0.0
    %94 = vmatpush1.msra.mxu0 %v48
    %95 = vmatprep.subr.mxu0 0.0
    %96 = vmatpush2.msra.mxu0 0.0
    %97 = vmatprep.subr.mxu0 0.0
    %98 = vmatpush2.msra.mxu0 0.0
    %99 = vmatprep.subr.mxu0 0.0
    %100 = vmatpush2.msra.mxu0 0.0
    %101 = vmatprep.subr.mxu0 0.0
    %102 = vmatpush2.msra.mxu0 0.0
    %103 = vmatprep.subr.mxu0 0.0
    %104 = vmatpush2.msra.mxu0 0.0
    %105 = vmatprep.subr.mxu0 0.0
    %106 = vmatpush2.msra.mxu0 0.0
    %107 = vmatprep.subr.mxu0 0.0
    %108 = vmatpush2.msra.mxu0 0.0
    %109 = vmatprep.subr.mxu0 0.0
    %110 = vmatpush2.msra.mxu0 0.0
    %111 = vmatprep.subr.mxu0 0.0
    %112 = vmatpush2.msra.mxu0 0.0
    %113 = vmatprep.subr.mxu0 0.0
    %114 = vmatpush2.msra.mxu0 0.0
    %115 = vmatprep.subr.mxu0 0.0
    %116 = vmatpush2.msra.mxu0 0.0
    %117 = vmatprep.subr.mxu0 0.0
    %118 = vmatpush2.msra.mxu0 0.0
    %119 = vmatprep.subr.mxu0 0.0
    %120 = vmatpush2.msra.mxu0 0.0
    %121 = vmatprep.subr.mxu0 0.0
    %122 = vmatpush2.msra.mxu0 0.0
    %123 = vmatprep.subr.mxu0 0.0
    %124 = vmatpush2.msra.mxu0 0.0
    %125 = vmatprep.subr.mxu0 0.0
    %126 = vmatpush2.msra.mxu0 0.0
    %127 = vmatprep.mubr.f32.mxu0 0.0
    %128 = vmatmul.mubr.f32.gmra.mxu0 %v61
    %v129 = vpop.f32.mrf.mxu0
    %v130 = vadd.f32 %v57, %v129
    %v131 = vpop.f32.mrf.mxu0
    %132 = vdwg.mxu0
    %v133 = vmax.f32 %v130, 0.0
    %v134 = vld [vmem:[%s3] sm:$0x1]
    %v136 = vlaneseq
    %v137 = vshrl.u32 %v136, 7
    %v138 = vsub.s32 0, %v137
    %v139 = vrot.slane %v134, %v138
    %v141 = vmul.f32 %v133, %v139
    %v142 = vsel %vm59, %v141, 0.0
    %143 = vadd.xlane.f32.xlu0 %v142
    %v144 = vpop.xlane.xlu0 %143
    %s145 = sld [smem:[#allocation2]]
    %v146 = vstv %s145
    %v147 = vadd.f32 %v144, %v146
    %vm148 = vcmp.gt.f32.partialorder %v147, 20.0
    %v149 = vmin.f32 %v147, 20.0
    %v150 = vmul.f32 %v149, 1.442695
    %v151 = vpow.pop %v150
    %v152 = vadd.f32 %v151, 1.0
    %v153 = vlog2.pop %v152
    %v154 = vmul.f32 %v153, 0.6931472
    %v155 = vmul.f32 -0.5, %v151
    %v156 = vadd.f32 %v155, 1.0
    %v157 = vmul.f32 %v156, %v151
    %v158 = vand.u32 2147483647, %v151
    %vm159 = vcmp.lt.f32.partialorder %v158, 0.0004427343
    %v160 = vsel %vm159, %v157, %v154
    %v161 = vsel %vm148, %v147, %v160
    %vm162 = vcmask 7168
    %163 = vst.msk [vmem:[%s5] sm:$0xff] %vm162, %v161
    // Predicated region
    $region30: #{tpu_custom_call.1} parent=1 // pred_check
      _
    $region31: #{tpu_custom_call.1} parent=1 // pred_check_branch
      %165 = sbr.rel (0) target = $region33
    $region32: #{tpu_custom_call.1} parent=1 // pred_region
      _
    $region33: #{tpu_custom_call.1} parent=1 // pred_fallthru
      _
    // Predicated region
    $region34: #{tpu_custom_call.1} parent=1 // pred_check
      _
    $region35: #{tpu_custom_call.1} parent=1 // pred_check_branch
      %167 = sbr.rel (0) target = $region37
    $region36: #{tpu_custom_call.1} parent=1 // pred_region
      _
    $region37: #{tpu_custom_call.1} parent=1 // pred_fallthru
      _
    %168 = vsyncpa [#allocation4], 1
    %169 = vsyncpa [#allocation6], 1

</llo_original>
